<compile_context>
chip_gen: v5e
topology: v5e:2x2
jax: 0.10.0
libtpu: 0.0.40
codegen_flags: <defaults>
</compile_context>

<pallas_src>
import functools

import jax
import jax.numpy as jnp
from jax import lax
from jax.experimental import pallas as pl
from jax.experimental.pallas import tpu as pltpu


def _conv2d_kernel(x_ref, w_ref, b_ref, o_ref, *, T, Cout, HW):
    """Per-image VPU multiply-accumulate over pre-shifted tap rows.

    x_ref: (bn, T, HW)     pre-shifted input rows, T = KH*KW*Cin
    w_ref: (T, Cout, HW)   per-tap weights, pre-broadcast across lanes (f32)
    b_ref: (Cout, HW)      bias, pre-broadcast across lanes (f32)
    o_ref: (bn, Cout, HW)  full output map (valid region sliced by wrapper)
    """
    bn = o_ref.shape[0]
    bias_tile = b_ref[...]                              # (Cout, HW), ~2 vregs

    def body(i, carry):
        # Per-image working set: x_img (~8 vregs) + acc (2) + temps — no spill.
        x_img = x_ref[i].astype(jnp.float32)            # (T, HW), cast hoisted
        acc = bias_tile                                 # bias-initialized acc
        for t in range(T):                              # static unroll, T = 27
            # (1, HW) row -> (Cout, HW) FMA against pre-broadcast weights.
            acc = acc + w_ref[t] * x_img[t][None, :]
        o_ref[i] = acc.astype(o_ref.dtype)
        return carry

    lax.fori_loop(0, bn, body, 0, unroll=min(bn, 4))


def conv2d_pallas(x_nchw, weight_oihw, bias, *, block_n=None):
    """Conv2d, stride=1, padding=0.  x: (N, Cin, H, W) -> (N, Cout, OH, OW)."""
    N, Cin, H, W = x_nchw.shape
    Cout, Cin_w, KH, KW = weight_oihw.shape
    assert Cin_w == Cin
    OH, OW = H - KH + 1, W - KW + 1
    HW = H * W
    T = KH * KW * Cin
    pad = (KH - 1) * W + (KW - 1)                 # largest tap shift

    if block_n is None:
        # >=2 grid steps whenever N >= 2 (keeps both v7x TensorCores busy),
        # capped at 32 images/step to amortize per-step overhead at large N.
        block_n = max(1, min(32, pl.cdiv(N, 2)))
    grid_n = pl.cdiv(N, block_n)

    # ---- wrapper-side layout prep (cheap, a few KB per image) ---------------
    # Flatten spatial onto the 128-lane axis and pre-shift: tap (kh, kw) is the
    # static lane shift s = kh*W + kw of the zero-padded flat image, so the
    # kernel only ever does aligned lane-dense loads.
    x_pad = jnp.pad(x_nchw.reshape(N, Cin, HW), ((0, 0), (0, 0), (0, pad)))
    taps = []
    for kh in range(KH):
        for kw in range(KW):
            s = kh * W + kw
            taps.append(lax.slice_in_dim(x_pad, s, s + HW, axis=2))
    x_taps = jnp.concatenate(taps, axis=1)        # (N, T, HW), t=(kh*KW+kw)*Cin+ci

    # Weights pre-broadcast to a lane-dense (T, Cout, HW) f32 constant and the
    # bias to (Cout, HW): the kernel never lane-broadcasts a scalar.
    w_tap = weight_oihw.transpose(2, 3, 1, 0).reshape(T, Cout).astype(jnp.float32)
    w_bcast = jnp.broadcast_to(w_tap[:, :, None], (T, Cout, HW))
    b_bcast = jnp.broadcast_to(bias.astype(jnp.float32)[:, None], (Cout, HW))

    kernel = functools.partial(_conv2d_kernel, T=T, Cout=Cout, HW=HW)

    out_full = pl.pallas_call(
        kernel,
        out_shape=jax.ShapeDtypeStruct((N, Cout, HW), x_nchw.dtype),
        grid=(grid_n,),
        in_specs=[
            pl.BlockSpec((block_n, T, HW), lambda n: (n, 0, 0)),
            pl.BlockSpec((T, Cout, HW), lambda n: (0, 0, 0)),   # constant block
            pl.BlockSpec((Cout, HW), lambda n: (0, 0)),         # constant block
        ],
        out_specs=pl.BlockSpec((block_n, Cout, HW), lambda n: (n, 0, 0)),
        compiler_params=pltpu.CompilerParams(
            dimension_semantics=("parallel",)
        ),
    )(x_taps, w_bcast, b_bcast)

    # Valid region: flat index r*W + c for r < OH, c < OW.  Output is already
    # NCHW; this tiny slice is the only post-kernel op.
    return out_full.reshape(N, Cout, H, W)[:, :, :OH, :OW]


if __name__ == "__main__":
    key = jax.random.PRNGKey(0)
    k_x, k_w, k_b = jax.random.split(key, 3)

    N, Cin, H, W = 2, 3, 16, 16
    Cout, KH, KW = 6, 3, 3

    # Deterministic parameter init (PyTorch-style uniform(-1/sqrt(fan_in), +)).
    fan_in = Cin * KH * KW
    bound = 1.0 / (fan_in ** 0.5)
    weight = jax.random.uniform(
        k_w, (Cout, Cin, KH, KW), jnp.float32, minval=-bound, maxval=bound
    )
    bias = jax.random.uniform(
        k_b, (Cout,), jnp.float32, minval=-bound, maxval=bound
    )
    x = jax.random.normal(k_x, (N, Cin, H, W), jnp.float32)

    out = conv2d_pallas(x, weight, bias)
    out = jax.block_until_ready(out)

    # Reference check against XLA conv (NCHW/OIHW, stride 1, VALID padding).
    ref = lax.conv_general_dilated(
        x, weight, window_strides=(1, 1), padding="VALID",
        dimension_numbers=("NCHW", "OIHW", "NCHW"),
    ) + bias.reshape(1, Cout, 1, 1)
    assert out.shape == (N, Cout, H - KH + 1, W - KW + 1)
    assert jnp.allclose(out, ref, atol=1e-4, rtol=1e-4)

    print("KERNEL_OK")
</pallas_src>

<mosaic_0001>
module attributes {stable_mosaic.version = 11 : i64} {
  func.func @_conv2d_kernel(%arg0: i32, %arg1: memref<1x27x256xf32, #tpu.memory_space<vmem>>, %arg2: memref<27x6x256xf32, #tpu.memory_space<vmem>>, %arg3: memref<6x256xf32, #tpu.memory_space<vmem>>, %arg4: memref<1x6x256xf32, #tpu.memory_space<vmem>>) attributes {dimension_semantics = [#tpu.dimension_semantics<parallel>], iteration_bounds = array<i64: 2>, scalar_prefetch = 0 : i64, scratch_operands = 0 : i64, tpu.core_type = #tpu.core_type<tc>, window_params = [{transform_indices = @transform_0, window_bounds = array<i64: 1, 27, 256>}, {pipeline_mode = #tpu.pipeline_mode<synchronous>, transform_indices = @transform_1, window_bounds = array<i64: 27, 6, 256>}, {pipeline_mode = #tpu.pipeline_mode<synchronous>, transform_indices = @transform_2, window_bounds = array<i64: 6, 256>}, {transform_indices = @transform_3, window_bounds = array<i64: 1, 6, 256>}]} {
    %c0 = arith.constant 0 : index
    %c0_0 = arith.constant 0 : index
    %0 = vector.load %arg3[%c0, %c0_0] : memref<6x256xf32, #tpu.memory_space<vmem>>, vector<6x256xf32>
    %c0_i32 = arith.constant 0 : i32
    %1 = arith.index_cast %c0_i32 : i32 to index
    %c0_1 = arith.constant 0 : index
    %c0_2 = arith.constant 0 : index
    %2 = vector.load %arg1[%1, %c0_1, %c0_2] : memref<1x27x256xf32, #tpu.memory_space<vmem>>, vector<1x27x256xf32>
    %3 = vector.shape_cast %2 : vector<1x27x256xf32> to vector<27x256xf32>
    %c0_3 = arith.constant 0 : index
    %c0_4 = arith.constant 0 : index
    %c0_5 = arith.constant 0 : index
    %4 = vector.load %arg2[%c0_3, %c0_4, %c0_5] : memref<27x6x256xf32, #tpu.memory_space<vmem>>, vector<1x6x256xf32>
    %5 = vector.shape_cast %4 : vector<1x6x256xf32> to vector<6x256xf32>
    %6 = vector.extract_strided_slice %3 {offsets = [0, 0], sizes = [1, 256], strides = [1, 1]} : vector<27x256xf32> to vector<1x256xf32>
    %7 = vector.shape_cast %6 : vector<1x256xf32> to vector<256xf32>
    %8 = vector.shape_cast %7 : vector<256xf32> to vector<1x256xf32>
    %9 = vector.broadcast %8 : vector<1x256xf32> to vector<6x256xf32>
    %10 = arith.mulf %5, %9 : vector<6x256xf32>
    %11 = arith.addf %0, %10 : vector<6x256xf32>
    %c1 = arith.constant 1 : index
    %c0_6 = arith.constant 0 : index
    %c0_7 = arith.constant 0 : index
    %12 = vector.load %arg2[%c1, %c0_6, %c0_7] : memref<27x6x256xf32, #tpu.memory_space<vmem>>, vector<1x6x256xf32>
    %13 = vector.shape_cast %12 : vector<1x6x256xf32> to vector<6x256xf32>
    %14 = vector.extract_strided_slice %3 {offsets = [1, 0], sizes = [1, 256], strides = [1, 1]} : vector<27x256xf32> to vector<1x256xf32>
    %15 = vector.shape_cast %14 : vector<1x256xf32> to vector<256xf32>
    %16 = vector.shape_cast %15 : vector<256xf32> to vector<1x256xf32>
    %17 = vector.broadcast %16 : vector<1x256xf32> to vector<6x256xf32>
    %18 = arith.mulf %13, %17 : vector<6x256xf32>
    %19 = arith.addf %11, %18 : vector<6x256xf32>
    %c2 = arith.constant 2 : index
    %c0_8 = arith.constant 0 : index
    %c0_9 = arith.constant 0 : index
    %20 = vector.load %arg2[%c2, %c0_8, %c0_9] : memref<27x6x256xf32, #tpu.memory_space<vmem>>, vector<1x6x256xf32>
    %21 = vector.shape_cast %20 : vector<1x6x256xf32> to vector<6x256xf32>
    %22 = vector.extract_strided_slice %3 {offsets = [2, 0], sizes = [1, 256], strides = [1, 1]} : vector<27x256xf32> to vector<1x256xf32>
    %23 = vector.shape_cast %22 : vector<1x256xf32> to vector<256xf32>
    %24 = vector.shape_cast %23 : vector<256xf32> to vector<1x256xf32>
    %25 = vector.broadcast %24 : vector<1x256xf32> to vector<6x256xf32>
    %26 = arith.mulf %21, %25 : vector<6x256xf32>
    %27 = arith.addf %19, %26 : vector<6x256xf32>
    %c3 = arith.constant 3 : index
    %c0_10 = arith.constant 0 : index
    %c0_11 = arith.constant 0 : index
    %28 = vector.load %arg2[%c3, %c0_10, %c0_11] : memref<27x6x256xf32, #tpu.memory_space<vmem>>, vector<1x6x256xf32>
    %29 = vector.shape_cast %28 : vector<1x6x256xf32> to vector<6x256xf32>
    %30 = vector.extract_strided_slice %3 {offsets = [3, 0], sizes = [1, 256], strides = [1, 1]} : vector<27x256xf32> to vector<1x256xf32>
    %31 = vector.shape_cast %30 : vector<1x256xf32> to vector<256xf32>
    %32 = vector.shape_cast %31 : vector<256xf32> to vector<1x256xf32>
    %33 = vector.broadcast %32 : vector<1x256xf32> to vector<6x256xf32>
    %34 = arith.mulf %29, %33 : vector<6x256xf32>
    %35 = arith.addf %27, %34 : vector<6x256xf32>
    %c4 = arith.constant 4 : index
    %c0_12 = arith.constant 0 : index
    %c0_13 = arith.constant 0 : index
    %36 = vector.load %arg2[%c4, %c0_12, %c0_13] : memref<27x6x256xf32, #tpu.memory_space<vmem>>, vector<1x6x256xf32>
    %37 = vector.shape_cast %36 : vector<1x6x256xf32> to vector<6x256xf32>
    %38 = vector.extract_strided_slice %3 {offsets = [4, 0], sizes = [1, 256], strides = [1, 1]} : vector<27x256xf32> to vector<1x256xf32>
    %39 = vector.shape_cast %38 : vector<1x256xf32> to vector<256xf32>
    %40 = vector.shape_cast %39 : vector<256xf32> to vector<1x256xf32>
    %41 = vector.broadcast %40 : vector<1x256xf32> to vector<6x256xf32>
    %42 = arith.mulf %37, %41 : vector<6x256xf32>
    %43 = arith.addf %35, %42 : vector<6x256xf32>
    %c5 = arith.constant 5 : index
    %c0_14 = arith.constant 0 : index
    %c0_15 = arith.constant 0 : index
    %44 = vector.load %arg2[%c5, %c0_14, %c0_15] : memref<27x6x256xf32, #tpu.memory_space<vmem>>, vector<1x6x256xf32>
    %45 = vector.shape_cast %44 : vector<1x6x256xf32> to vector<6x256xf32>
    %46 = vector.extract_strided_slice %3 {offsets = [5, 0], sizes = [1, 256], strides = [1, 1]} : vector<27x256xf32> to vector<1x256xf32>
    %47 = vector.shape_cast %46 : vector<1x256xf32> to vector<256xf32>
    %48 = vector.shape_cast %47 : vector<256xf32> to vector<1x256xf32>
    %49 = vector.broadcast %48 : vector<1x256xf32> to vector<6x256xf32>
    %50 = arith.mulf %45, %49 : vector<6x256xf32>
    %51 = arith.addf %43, %50 : vector<6x256xf32>
    %c6 = arith.constant 6 : index
    %c0_16 = arith.constant 0 : index
    %c0_17 = arith.constant 0 : index
    %52 = vector.load %arg2[%c6, %c0_16, %c0_17] : memref<27x6x256xf32, #tpu.memory_space<vmem>>, vector<1x6x256xf32>
    %53 = vector.shape_cast %52 : vector<1x6x256xf32> to vector<6x256xf32>
    %54 = vector.extract_strided_slice %3 {offsets = [6, 0], sizes = [1, 256], strides = [1, 1]} : vector<27x256xf32> to vector<1x256xf32>
    %55 = vector.shape_cast %54 : vector<1x256xf32> to vector<256xf32>
    %56 = vector.shape_cast %55 : vector<256xf32> to vector<1x256xf32>
    %57 = vector.broadcast %56 : vector<1x256xf32> to vector<6x256xf32>
    %58 = arith.mulf %53, %57 : vector<6x256xf32>
    %59 = arith.addf %51, %58 : vector<6x256xf32>
    %c7 = arith.constant 7 : index
    %c0_18 = arith.constant 0 : index
    %c0_19 = arith.constant 0 : index
    %60 = vector.load %arg2[%c7, %c0_18, %c0_19] : memref<27x6x256xf32, #tpu.memory_space<vmem>>, vector<1x6x256xf32>
    %61 = vector.shape_cast %60 : vector<1x6x256xf32> to vector<6x256xf32>
    %62 = vector.extract_strided_slice %3 {offsets = [7, 0], sizes = [1, 256], strides = [1, 1]} : vector<27x256xf32> to vector<1x256xf32>
    %63 = vector.shape_cast %62 : vector<1x256xf32> to vector<256xf32>
    %64 = vector.shape_cast %63 : vector<256xf32> to vector<1x256xf32>
    %65 = vector.broadcast %64 : vector<1x256xf32> to vector<6x256xf32>
    %66 = arith.mulf %61, %65 : vector<6x256xf32>
    %67 = arith.addf %59, %66 : vector<6x256xf32>
    %c8 = arith.constant 8 : index
    %c0_20 = arith.constant 0 : index
    %c0_21 = arith.constant 0 : index
    %68 = vector.load %arg2[%c8, %c0_20, %c0_21] : memref<27x6x256xf32, #tpu.memory_space<vmem>>, vector<1x6x256xf32>
    %69 = vector.shape_cast %68 : vector<1x6x256xf32> to vector<6x256xf32>
    %70 = vector.extract_strided_slice %3 {offsets = [8, 0], sizes = [1, 256], strides = [1, 1]} : vector<27x256xf32> to vector<1x256xf32>
    %71 = vector.shape_cast %70 : vector<1x256xf32> to vector<256xf32>
    %72 = vector.shape_cast %71 : vector<256xf32> to vector<1x256xf32>
    %73 = vector.broadcast %72 : vector<1x256xf32> to vector<6x256xf32>
    %74 = arith.mulf %69, %73 : vector<6x256xf32>
    %75 = arith.addf %67, %74 : vector<6x256xf32>
    %c9 = arith.constant 9 : index
    %c0_22 = arith.constant 0 : index
    %c0_23 = arith.constant 0 : index
    %76 = vector.load %arg2[%c9, %c0_22, %c0_23] : memref<27x6x256xf32, #tpu.memory_space<vmem>>, vector<1x6x256xf32>
    %77 = vector.shape_cast %76 : vector<1x6x256xf32> to vector<6x256xf32>
    %78 = vector.extract_strided_slice %3 {offsets = [9, 0], sizes = [1, 256], strides = [1, 1]} : vector<27x256xf32> to vector<1x256xf32>
    %79 = vector.shape_cast %78 : vector<1x256xf32> to vector<256xf32>
    %80 = vector.shape_cast %79 : vector<256xf32> to vector<1x256xf32>
    %81 = vector.broadcast %80 : vector<1x256xf32> to vector<6x256xf32>
    %82 = arith.mulf %77, %81 : vector<6x256xf32>
    %83 = arith.addf %75, %82 : vector<6x256xf32>
    %c10 = arith.constant 10 : index
    %c0_24 = arith.constant 0 : index
    %c0_25 = arith.constant 0 : index
    %84 = vector.load %arg2[%c10, %c0_24, %c0_25] : memref<27x6x256xf32, #tpu.memory_space<vmem>>, vector<1x6x256xf32>
    %85 = vector.shape_cast %84 : vector<1x6x256xf32> to vector<6x256xf32>
    %86 = vector.extract_strided_slice %3 {offsets = [10, 0], sizes = [1, 256], strides = [1, 1]} : vector<27x256xf32> to vector<1x256xf32>
    %87 = vector.shape_cast %86 : vector<1x256xf32> to vector<256xf32>
    %88 = vector.shape_cast %87 : vector<256xf32> to vector<1x256xf32>
    %89 = vector.broadcast %88 : vector<1x256xf32> to vector<6x256xf32>
    %90 = arith.mulf %85, %89 : vector<6x256xf32>
    %91 = arith.addf %83, %90 : vector<6x256xf32>
    %c11 = arith.constant 11 : index
    %c0_26 = arith.constant 0 : index
    %c0_27 = arith.constant 0 : index
    %92 = vector.load %arg2[%c11, %c0_26, %c0_27] : memref<27x6x256xf32, #tpu.memory_space<vmem>>, vector<1x6x256xf32>
    %93 = vector.shape_cast %92 : vector<1x6x256xf32> to vector<6x256xf32>
    %94 = vector.extract_strided_slice %3 {offsets = [11, 0], sizes = [1, 256], strides = [1, 1]} : vector<27x256xf32> to vector<1x256xf32>
    %95 = vector.shape_cast %94 : vector<1x256xf32> to vector<256xf32>
    %96 = vector.shape_cast %95 : vector<256xf32> to vector<1x256xf32>
    %97 = vector.broadcast %96 : vector<1x256xf32> to vector<6x256xf32>
    %98 = arith.mulf %93, %97 : vector<6x256xf32>
    %99 = arith.addf %91, %98 : vector<6x256xf32>
    %c12 = arith.constant 12 : index
    %c0_28 = arith.constant 0 : index
    %c0_29 = arith.constant 0 : index
    %100 = vector.load %arg2[%c12, %c0_28, %c0_29] : memref<27x6x256xf32, #tpu.memory_space<vmem>>, vector<1x6x256xf32>
    %101 = vector.shape_cast %100 : vector<1x6x256xf32> to vector<6x256xf32>
    %102 = vector.extract_strided_slice %3 {offsets = [12, 0], sizes = [1, 256], strides = [1, 1]} : vector<27x256xf32> to vector<1x256xf32>
    %103 = vector.shape_cast %102 : vector<1x256xf32> to vector<256xf32>
    %104 = vector.shape_cast %103 : vector<256xf32> to vector<1x256xf32>
    %105 = vector.broadcast %104 : vector<1x256xf32> to vector<6x256xf32>
    %106 = arith.mulf %101, %105 : vector<6x256xf32>
    %107 = arith.addf %99, %106 : vector<6x256xf32>
    %c13 = arith.constant 13 : index
    %c0_30 = arith.constant 0 : index
    %c0_31 = arith.constant 0 : index
    %108 = vector.load %arg2[%c13, %c0_30, %c0_31] : memref<27x6x256xf32, #tpu.memory_space<vmem>>, vector<1x6x256xf32>
    %109 = vector.shape_cast %108 : vector<1x6x256xf32> to vector<6x256xf32>
    %110 = vector.extract_strided_slice %3 {offsets = [13, 0], sizes = [1, 256], strides = [1, 1]} : vector<27x256xf32> to vector<1x256xf32>
    %111 = vector.shape_cast %110 : vector<1x256xf32> to vector<256xf32>
    %112 = vector.shape_cast %111 : vector<256xf32> to vector<1x256xf32>
    %113 = vector.broadcast %112 : vector<1x256xf32> to vector<6x256xf32>
    %114 = arith.mulf %109, %113 : vector<6x256xf32>
    %115 = arith.addf %107, %114 : vector<6x256xf32>
    %c14 = arith.constant 14 : index
    %c0_32 = arith.constant 0 : index
    %c0_33 = arith.constant 0 : index
    %116 = vector.load %arg2[%c14, %c0_32, %c0_33] : memref<27x6x256xf32, #tpu.memory_space<vmem>>, vector<1x6x256xf32>
    %117 = vector.shape_cast %116 : vector<1x6x256xf32> to vector<6x256xf32>
    %118 = vector.extract_strided_slice %3 {offsets = [14, 0], sizes = [1, 256], strides = [1, 1]} : vector<27x256xf32> to vector<1x256xf32>
    %119 = vector.shape_cast %118 : vector<1x256xf32> to vector<256xf32>
    %120 = vector.shape_cast %119 : vector<256xf32> to vector<1x256xf32>
    %121 = vector.broadcast %120 : vector<1x256xf32> to vector<6x256xf32>
    %122 = arith.mulf %117, %121 : vector<6x256xf32>
    %123 = arith.addf %115, %122 : vector<6x256xf32>
    %c15 = arith.constant 15 : index
    %c0_34 = arith.constant 0 : index
    %c0_35 = arith.constant 0 : index
    %124 = vector.load %arg2[%c15, %c0_34, %c0_35] : memref<27x6x256xf32, #tpu.memory_space<vmem>>, vector<1x6x256xf32>
    %125 = vector.shape_cast %124 : vector<1x6x256xf32> to vector<6x256xf32>
    %126 = vector.extract_strided_slice %3 {offsets = [15, 0], sizes = [1, 256], strides = [1, 1]} : vector<27x256xf32> to vector<1x256xf32>
    %127 = vector.shape_cast %126 : vector<1x256xf32> to vector<256xf32>
    %128 = vector.shape_cast %127 : vector<256xf32> to vector<1x256xf32>
    %129 = vector.broadcast %128 : vector<1x256xf32> to vector<6x256xf32>
    %130 = arith.mulf %125, %129 : vector<6x256xf32>
    %131 = arith.addf %123, %130 : vector<6x256xf32>
    %c16 = arith.constant 16 : index
    %c0_36 = arith.constant 0 : index
    %c0_37 = arith.constant 0 : index
    %132 = vector.load %arg2[%c16, %c0_36, %c0_37] : memref<27x6x256xf32, #tpu.memory_space<vmem>>, vector<1x6x256xf32>
    %133 = vector.shape_cast %132 : vector<1x6x256xf32> to vector<6x256xf32>
    %134 = vector.extract_strided_slice %3 {offsets = [16, 0], sizes = [1, 256], strides = [1, 1]} : vector<27x256xf32> to vector<1x256xf32>
    %135 = vector.shape_cast %134 : vector<1x256xf32> to vector<256xf32>
    %136 = vector.shape_cast %135 : vector<256xf32> to vector<1x256xf32>
    %137 = vector.broadcast %136 : vector<1x256xf32> to vector<6x256xf32>
    %138 = arith.mulf %133, %137 : vector<6x256xf32>
    %139 = arith.addf %131, %138 : vector<6x256xf32>
    %c17 = arith.constant 17 : index
    %c0_38 = arith.constant 0 : index
    %c0_39 = arith.constant 0 : index
    %140 = vector.load %arg2[%c17, %c0_38, %c0_39] : memref<27x6x256xf32, #tpu.memory_space<vmem>>, vector<1x6x256xf32>
    %141 = vector.shape_cast %140 : vector<1x6x256xf32> to vector<6x256xf32>
    %142 = vector.extract_strided_slice %3 {offsets = [17, 0], sizes = [1, 256], strides = [1, 1]} : vector<27x256xf32> to vector<1x256xf32>
    %143 = vector.shape_cast %142 : vector<1x256xf32> to vector<256xf32>
    %144 = vector.shape_cast %143 : vector<256xf32> to vector<1x256xf32>
    %145 = vector.broadcast %144 : vector<1x256xf32> to vector<6x256xf32>
    %146 = arith.mulf %141, %145 : vector<6x256xf32>
    %147 = arith.addf %139, %146 : vector<6x256xf32>
    %c18 = arith.constant 18 : index
    %c0_40 = arith.constant 0 : index
    %c0_41 = arith.constant 0 : index
    %148 = vector.load %arg2[%c18, %c0_40, %c0_41] : memref<27x6x256xf32, #tpu.memory_space<vmem>>, vector<1x6x256xf32>
    %149 = vector.shape_cast %148 : vector<1x6x256xf32> to vector<6x256xf32>
    %150 = vector.extract_strided_slice %3 {offsets = [18, 0], sizes = [1, 256], strides = [1, 1]} : vector<27x256xf32> to vector<1x256xf32>
    %151 = vector.shape_cast %150 : vector<1x256xf32> to vector<256xf32>
    %152 = vector.shape_cast %151 : vector<256xf32> to vector<1x256xf32>
    %153 = vector.broadcast %152 : vector<1x256xf32> to vector<6x256xf32>
    %154 = arith.mulf %149, %153 : vector<6x256xf32>
    %155 = arith.addf %147, %154 : vector<6x256xf32>
    %c19 = arith.constant 19 : index
    %c0_42 = arith.constant 0 : index
    %c0_43 = arith.constant 0 : index
    %156 = vector.load %arg2[%c19, %c0_42, %c0_43] : memref<27x6x256xf32, #tpu.memory_space<vmem>>, vector<1x6x256xf32>
    %157 = vector.shape_cast %156 : vector<1x6x256xf32> to vector<6x256xf32>
    %158 = vector.extract_strided_slice %3 {offsets = [19, 0], sizes = [1, 256], strides = [1, 1]} : vector<27x256xf32> to vector<1x256xf32>
    %159 = vector.shape_cast %158 : vector<1x256xf32> to vector<256xf32>
    %160 = vector.shape_cast %159 : vector<256xf32> to vector<1x256xf32>
    %161 = vector.broadcast %160 : vector<1x256xf32> to vector<6x256xf32>
    %162 = arith.mulf %157, %161 : vector<6x256xf32>
    %163 = arith.addf %155, %162 : vector<6x256xf32>
    %c20 = arith.constant 20 : index
    %c0_44 = arith.constant 0 : index
    %c0_45 = arith.constant 0 : index
    %164 = vector.load %arg2[%c20, %c0_44, %c0_45] : memref<27x6x256xf32, #tpu.memory_space<vmem>>, vector<1x6x256xf32>
    %165 = vector.shape_cast %164 : vector<1x6x256xf32> to vector<6x256xf32>
    %166 = vector.extract_strided_slice %3 {offsets = [20, 0], sizes = [1, 256], strides = [1, 1]} : vector<27x256xf32> to vector<1x256xf32>
    %167 = vector.shape_cast %166 : vector<1x256xf32> to vector<256xf32>
    %168 = vector.shape_cast %167 : vector<256xf32> to vector<1x256xf32>
    %169 = vector.broadcast %168 : vector<1x256xf32> to vector<6x256xf32>
    %170 = arith.mulf %165, %169 : vector<6x256xf32>
    %171 = arith.addf %163, %170 : vector<6x256xf32>
    %c21 = arith.constant 21 : index
    %c0_46 = arith.constant 0 : index
    %c0_47 = arith.constant 0 : index
    %172 = vector.load %arg2[%c21, %c0_46, %c0_47] : memref<27x6x256xf32, #tpu.memory_space<vmem>>, vector<1x6x256xf32>
    %173 = vector.shape_cast %172 : vector<1x6x256xf32> to vector<6x256xf32>
    %174 = vector.extract_strided_slice %3 {offsets = [21, 0], sizes = [1, 256], strides = [1, 1]} : vector<27x256xf32> to vector<1x256xf32>
    %175 = vector.shape_cast %174 : vector<1x256xf32> to vector<256xf32>
    %176 = vector.shape_cast %175 : vector<256xf32> to vector<1x256xf32>
    %177 = vector.broadcast %176 : vector<1x256xf32> to vector<6x256xf32>
    %178 = arith.mulf %173, %177 : vector<6x256xf32>
    %179 = arith.addf %171, %178 : vector<6x256xf32>
    %c22 = arith.constant 22 : index
    %c0_48 = arith.constant 0 : index
    %c0_49 = arith.constant 0 : index
    %180 = vector.load %arg2[%c22, %c0_48, %c0_49] : memref<27x6x256xf32, #tpu.memory_space<vmem>>, vector<1x6x256xf32>
    %181 = vector.shape_cast %180 : vector<1x6x256xf32> to vector<6x256xf32>
    %182 = vector.extract_strided_slice %3 {offsets = [22, 0], sizes = [1, 256], strides = [1, 1]} : vector<27x256xf32> to vector<1x256xf32>
    %183 = vector.shape_cast %182 : vector<1x256xf32> to vector<256xf32>
    %184 = vector.shape_cast %183 : vector<256xf32> to vector<1x256xf32>
    %185 = vector.broadcast %184 : vector<1x256xf32> to vector<6x256xf32>
    %186 = arith.mulf %181, %185 : vector<6x256xf32>
    %187 = arith.addf %179, %186 : vector<6x256xf32>
    %c23 = arith.constant 23 : index
    %c0_50 = arith.constant 0 : index
    %c0_51 = arith.constant 0 : index
    %188 = vector.load %arg2[%c23, %c0_50, %c0_51] : memref<27x6x256xf32, #tpu.memory_space<vmem>>, vector<1x6x256xf32>
    %189 = vector.shape_cast %188 : vector<1x6x256xf32> to vector<6x256xf32>
    %190 = vector.extract_strided_slice %3 {offsets = [23, 0], sizes = [1, 256], strides = [1, 1]} : vector<27x256xf32> to vector<1x256xf32>
    %191 = vector.shape_cast %190 : vector<1x256xf32> to vector<256xf32>
    %192 = vector.shape_cast %191 : vector<256xf32> to vector<1x256xf32>
    %193 = vector.broadcast %192 : vector<1x256xf32> to vector<6x256xf32>
    %194 = arith.mulf %189, %193 : vector<6x256xf32>
    %195 = arith.addf %187, %194 : vector<6x256xf32>
    %c24 = arith.constant 24 : index
    %c0_52 = arith.constant 0 : index
    %c0_53 = arith.constant 0 : index
    %196 = vector.load %arg2[%c24, %c0_52, %c0_53] : memref<27x6x256xf32, #tpu.memory_space<vmem>>, vector<1x6x256xf32>
    %197 = vector.shape_cast %196 : vector<1x6x256xf32> to vector<6x256xf32>
    %198 = vector.extract_strided_slice %3 {offsets = [24, 0], sizes = [1, 256], strides = [1, 1]} : vector<27x256xf32> to vector<1x256xf32>
    %199 = vector.shape_cast %198 : vector<1x256xf32> to vector<256xf32>
    %200 = vector.shape_cast %199 : vector<256xf32> to vector<1x256xf32>
    %201 = vector.broadcast %200 : vector<1x256xf32> to vector<6x256xf32>
    %202 = arith.mulf %197, %201 : vector<6x256xf32>
    %203 = arith.addf %195, %202 : vector<6x256xf32>
    %c25 = arith.constant 25 : index
    %c0_54 = arith.constant 0 : index
    %c0_55 = arith.constant 0 : index
    %204 = vector.load %arg2[%c25, %c0_54, %c0_55] : memref<27x6x256xf32, #tpu.memory_space<vmem>>, vector<1x6x256xf32>
    %205 = vector.shape_cast %204 : vector<1x6x256xf32> to vector<6x256xf32>
    %206 = vector.extract_strided_slice %3 {offsets = [25, 0], sizes = [1, 256], strides = [1, 1]} : vector<27x256xf32> to vector<1x256xf32>
    %207 = vector.shape_cast %206 : vector<1x256xf32> to vector<256xf32>
    %208 = vector.shape_cast %207 : vector<256xf32> to vector<1x256xf32>
    %209 = vector.broadcast %208 : vector<1x256xf32> to vector<6x256xf32>
    %210 = arith.mulf %205, %209 : vector<6x256xf32>
    %211 = arith.addf %203, %210 : vector<6x256xf32>
    %c26 = arith.constant 26 : index
    %c0_56 = arith.constant 0 : index
    %c0_57 = arith.constant 0 : index
    %212 = vector.load %arg2[%c26, %c0_56, %c0_57] : memref<27x6x256xf32, #tpu.memory_space<vmem>>, vector<1x6x256xf32>
    %213 = vector.shape_cast %212 : vector<1x6x256xf32> to vector<6x256xf32>
    %214 = vector.extract_strided_slice %3 {offsets = [26, 0], sizes = [1, 256], strides = [1, 1]} : vector<27x256xf32> to vector<1x256xf32>
    %215 = vector.shape_cast %214 : vector<1x256xf32> to vector<256xf32>
    %216 = vector.shape_cast %215 : vector<256xf32> to vector<1x256xf32>
    %217 = vector.broadcast %216 : vector<1x256xf32> to vector<6x256xf32>
    %218 = arith.mulf %213, %217 : vector<6x256xf32>
    %219 = arith.addf %211, %218 : vector<6x256xf32>
    %220 = arith.index_cast %c0_i32 : i32 to index
    %c0_58 = arith.constant 0 : index
    %c0_59 = arith.constant 0 : index
    %221 = vector.load %arg4[%220, %c0_58, %c0_59] : memref<1x6x256xf32, #tpu.memory_space<vmem>>, vector<1x6x256xf32>
    %222 = vector.shape_cast %221 : vector<1x6x256xf32> to vector<6x256xf32>
    %223 = vector.shape_cast %219 : vector<6x256xf32> to vector<1x6x256xf32>
    tpu.vector_store %arg4[%220, %c0_58, %c0_59], %223 {strides = array<i32>} : memref<1x6x256xf32, #tpu.memory_space<vmem>>, vector<1x6x256xf32>,
    %c1_i32 = arith.constant 1 : i32
    return
  }
  func.func @transform_0(%arg0: i32) -> (i32, i32, i32) {
    %c0_i32 = arith.constant 0 : i32
    %c0_i32_0 = arith.constant 0 : i32
    %c0_i32_1 = arith.constant 0 : i32
    return %arg0, %c0_i32, %c0_i32_0 : i32, i32, i32
  }
  func.func @transform_1(%arg0: i32) -> (i32, i32, i32) {
    %c0_i32 = arith.constant 0 : i32
    %c0_i32_0 = arith.constant 0 : i32
    %c0_i32_1 = arith.constant 0 : i32
    %c0_i32_2 = arith.constant 0 : i32
    return %c0_i32, %c0_i32_0, %c0_i32_1 : i32, i32, i32
  }
  func.func @transform_2(%arg0: i32) -> (i32, i32) {
    %c0_i32 = arith.constant 0 : i32
    %c0_i32_0 = arith.constant 0 : i32
    %c0_i32_1 = arith.constant 0 : i32
    return %c0_i32, %c0_i32_0 : i32, i32
  }
  func.func @transform_3(%arg0: i32) -> (i32, i32, i32) {
    %c0_i32 = arith.constant 0 : i32
    %c0_i32_0 = arith.constant 0 : i32
    %c0_i32_1 = arith.constant 0 : i32
    return %arg0, %c0_i32, %c0_i32_0 : i32, i32, i32
  }
}

</mosaic_0001>

<llo_original>
// kernel: tpu_custom_call.1
$region0: #{tpu_custom_call.1}
  #allocation0 [shape = 'u32[]', space=smem, size = 0x4, offset = 0x4, fixed_abs, tag = 'smem constant byte address 0x4 - core index']
  #allocation1 [shape = 'u32[72,128]{1,0:T(1,128)}', space=vmem, size = 0x9000, scoped, tag = 'internal scratch']
  %s0 = inlined_call_operand.vmem [shape: f32[2,27,256], index: 0, kind: input, shape index: {}]
  %s1 = inlined_call_operand.vmem [shape: f32[27,6,256], index: 1, kind: input, shape index: {}]
  %s2 = inlined_call_operand.vmem [shape: f32[6,256], index: 2, kind: input, shape index: {}]
  %s3 = inlined_call_operand.vmem [shape: f32[2,6,256], index: 3, kind: output, shape index: {}]
  %s4 = sld [smem:[#allocation0]]
  $region45: #{tpu_custom_call.1} parent=0
    _
  %s6 = ssub.s32 1, %s4
  %s7 = scalar_select 0, %s6, %s4
  loop: start=0, step=1, limit=4
  $region2: #{tpu_custom_call.1} parent=0 // loop_pre_header
    _
  $region3: #{tpu_custom_call.1} parent=0 // loop_header
    %s9 = sphi 0, %s13
    %p10 = scmp.ge.s32.totalorder %s9, 4
    %s19 = sphi 0, %s21
    %s22 = sphi 0, %s19
    %s23 = sphi 0, %s22
    %s39 = sphi 0, %s23
    %s43 = sphi 0, %s43
    %s45 = sphi 0, %s43
    %s46 = sphi 0, %s45
    %s60 = sphi 0, %s46
    %s64 = sphi 0, %s64
    %s66 = sphi 0, %s64
    %s67 = sphi 0, %s66
    %s81 = sphi 0, %s67
    %s87 = sphi 0, %s89
    %s90 = sphi 0, %s87
    %s91 = sphi 0, %s90
    %s107 = sphi 0, %s91
  $region4: #{tpu_custom_call.1} parent=0 // loop_header_branch
    %12 = sbr.rel (%p10) target = $region8
  $region5: #{tpu_custom_call.1} parent=0 // loop_body
    %s14 = ssub.s32 %s9, 1
    %s15 = ssub.s32 %s9, 2
    %s16 = sadd.s32 %s9, 1
    %s17 = ssub.s32 %s9, %s16
    %p18 = scmp.eq.s32.totalorder %s17, 0
    %s20 = sadd.s32 %s19, 1
    %s21 = scalar_select %p18, %s19, %s20
    %p24 = pneg %p18
    %p25 = scmp.eq.s32.totalorder %s9, 1
    %p26 = por %p24, %p25
    %p27 = scmp.ne.s32.totalorder %s19, %s22
    %p28 = scmp.eq.s32.totalorder %s9, 0
    %p29 = por %p27, %p28
    %p30 = scmp.ne.s32.totalorder %s19, %s22
    %p31 = scmp.eq.s32.totalorder %s14, 1
    %p32 = por %p30, %p31
    %p33 = scmp.ne.s32.totalorder %s22, %s23
    %p34 = scmp.eq.s32.totalorder %s14, 0
    %p35 = por %p33, %p34
    %p36 = scmp.ne.s32.totalorder %s22, %s23
    %p37 = scmp.eq.s32.totalorder %s15, 1
    %p38 = por %p36, %p37
    %p40 = scmp.ne.s32.totalorder %s23, %s39
    %p41 = scmp.eq.s32.totalorder %s15, 0
    %p42 = por %p40, %p41
    %s44 = sadd.s32 %s43, 1
    %p47 = scmp.eq.s32.totalorder %s9, 1
    %p48 = scmp.ne.s32.totalorder %s43, %s45
    %p49 = scmp.eq.s32.totalorder %s9, 0
    %p50 = por %p48, %p49
    %p51 = scmp.ne.s32.totalorder %s43, %s45
    %p52 = scmp.eq.s32.totalorder %s14, 1
    %p53 = por %p51, %p52
    %p54 = scmp.ne.s32.totalorder %s45, %s46
    %p55 = scmp.eq.s32.totalorder %s14, 0
    %p56 = por %p54, %p55
    %p57 = scmp.ne.s32.totalorder %s45, %s46
    %p58 = scmp.eq.s32.totalorder %s15, 1
    %p59 = por %p57, %p58
    %p61 = scmp.ne.s32.totalorder %s46, %s60
    %p62 = scmp.eq.s32.totalorder %s15, 0
    %p63 = por %p61, %p62
    %s65 = sadd.s32 %s64, 1
    %p68 = scmp.eq.s32.totalorder %s9, 1
    %p69 = scmp.ne.s32.totalorder %s64, %s66
    %p70 = scmp.eq.s32.totalorder %s9, 0
    %p71 = por %p69, %p70
    %p72 = scmp.ne.s32.totalorder %s64, %s66
    %p73 = scmp.eq.s32.totalorder %s14, 1
    %p74 = por %p72, %p73
    %p75 = scmp.ne.s32.totalorder %s66, %s67
    %p76 = scmp.eq.s32.totalorder %s14, 0
    %p77 = por %p75, %p76
    %p78 = scmp.ne.s32.totalorder %s66, %s67
    %p79 = scmp.eq.s32.totalorder %s15, 1
    %p80 = por %p78, %p79
    %p82 = scmp.ne.s32.totalorder %s67, %s81
    %p83 = scmp.eq.s32.totalorder %s15, 0
    %p84 = por %p82, %p83
    %s85 = ssub.s32 %s9, %s16
    %p86 = scmp.eq.s32.totalorder %s85, 0
    %s88 = sadd.s32 %s87, 1
    %s89 = scalar_select %p86, %s87, %s88
    %p92 = pneg %p86
    %p93 = scmp.eq.s32.totalorder %s9, 1
    %p94 = por %p92, %p93
    %p95 = scmp.ne.s32.totalorder %s87, %s90
    %p96 = scmp.eq.s32.totalorder %s9, 0
    %p97 = por %p95, %p96
    %p98 = scmp.ne.s32.totalorder %s87, %s90
    %p99 = scmp.eq.s32.totalorder %s14, 1
    %p100 = por %p98, %p99
    %p101 = scmp.ne.s32.totalorder %s90, %s91
    %p102 = scmp.eq.s32.totalorder %s14, 0
    %p103 = por %p101, %p102
    %p104 = scmp.ne.s32.totalorder %s90, %s91
    %p105 = scmp.eq.s32.totalorder %s15, 1
    %p106 = por %p104, %p105
    %p108 = scmp.ne.s32.totalorder %s91, %s107
    %p109 = scmp.eq.s32.totalorder %s15, 0
    %p110 = por %p108, %p109
    %p111 = scmp.le.s32.totalorder 1, %s9
    %p112 = scmp.lt.s32.totalorder %s9, 3
    %p113 = pnand %p111, %p112
    %p114 = pneg %p113
    // Predicated region
    $region9: #{tpu_custom_call.1} parent=5 // pred_check
      _
    $region10: #{tpu_custom_call.1} parent=5 // pred_check_branch
      %116 = sbr.rel (%p113) target = $region12
    $region11: #{tpu_custom_call.1} parent=5 // pred_region
      %s117 = ssub.s32 %s9, 1
      // Predicated region
      $region13: #{tpu_custom_call.1} parent=11 // pred_check
        %p118 = pneg %p56
      $region14: #{tpu_custom_call.1} parent=11 // pred_check_branch
        %120 = sbr.rel (%p118) target = $region16
      $region15: #{tpu_custom_call.1} parent=11 // pred_region
        _
      $region16: #{tpu_custom_call.1} parent=11 // pred_fallthru
        _
      // Predicated region
      $region17: #{tpu_custom_call.1} parent=11 // pred_check
        %p121 = pneg %p77
      $region18: #{tpu_custom_call.1} parent=11 // pred_check_branch
        %123 = sbr.rel (%p121) target = $region20
      $region19: #{tpu_custom_call.1} parent=11 // pred_region
        _
      $region20: #{tpu_custom_call.1} parent=11 // pred_fallthru
        _
    $region12: #{tpu_custom_call.1} parent=5 // pred_fallthru
      _
    %p124 = scmp.lt.s32.totalorder %s9, 2
    // Predicated region
    $region21: #{tpu_custom_call.1} parent=5 // pred_check
      %p125 = pneg %p124
    $region22: #{tpu_custom_call.1} parent=5 // pred_check_branch
      %127 = sbr.rel (%p125) target = $region24
    $region23: #{tpu_custom_call.1} parent=5 // pred_region
      // Predicated region
      $region25: #{tpu_custom_call.1} parent=23 // pred_check
        %p128 = pneg %p29
      $region26: #{tpu_custom_call.1} parent=23 // pred_check_branch
        %130 = sbr.rel (%p128) target = $region28
      $region27: #{tpu_custom_call.1} parent=23 // pred_region
        %p131 = scmp.lt.s32.totalorder %s9, 1
        %s132 = scalar_select %p131, %s9, 1
        %s133 = smul.addr %s132, 8
        %s134 = smul.addr %s133, 8
        %s135 = scalar_lea.vmem %s0, %s134
      $region28: #{tpu_custom_call.1} parent=23 // pred_fallthru
        _
    $region24: #{tpu_custom_call.1} parent=5 // pred_fallthru
      _
    %p136 = scmp.le.s32.totalorder 1, %s9
    %p137 = scmp.lt.s32.totalorder %s9, 3
    %p138 = pnand %p136, %p137
    %p139 = pneg %p138
    // Predicated region
    $region29: #{tpu_custom_call.1} parent=5 // pred_check
      _
    $region30: #{tpu_custom_call.1} parent=5 // pred_check_branch
      %141 = sbr.rel (%p138) target = $region32
    $region31: #{tpu_custom_call.1} parent=5 // pred_region
      %s142 = ssub.s32 %s9, 1
      %p143 = scmp.lt.s32.totalorder %s14, 1
      %s144 = scalar_select %p143, %s14, 1
      %s145 = smul.addr %s144, 8
      %s146 = smul.addr %s145, 8
      %s147 = scalar_lea.vmem %s0, %s146
      %p148 = pneg %p35
      %p149 = pneg %p32
      %p150 = pneg %p56
      %p151 = pneg %p53
      %p152 = pneg %p77
      %p153 = pneg %p74
      %p154 = pneg %p103
      %p155 = pneg %p100
      %p156 = scmp.lt.s32.totalorder %s14, 1
      %s157 = scalar_select %p156, %s14, 1
      %s158 = smul.addr %s157, 2
      %s159 = smul.addr %s158, 8
      %s160 = scalar_lea.vmem %s3, %s159
      %p161 = scmp.lt.s32.totalorder %s14, 1
      %s162 = scalar_select %p161, %s14, 1
      %s163 = smul.addr %s162, 8
      %s164 = smul.addr %s163, 8
      %s165 = scalar_lea.vmem %s0, %s164
      %p166 = scmp.lt.s32.totalorder %s14, 1
      %s167 = scalar_select %p166, %s14, 1
      %s168 = smul.addr %s167, 2
      %s169 = smul.addr %s168, 8
      %s170 = scalar_lea.vmem %s3, %s169
      %v171 = vld [vmem:[%s2] sm:$0x3f]
      %v172 = vld [vmem:[%s2 + $0x8] sm:$0x3f]
      %v173 = vld [vmem:[%s165] sm:$0xff]
      %v174 = vld [vmem:[%s165 + $0x8] sm:$0xff]
      %v175 = vld [vmem:[%s165 + $0x10] sm:$0xff]
      %v176 = vld [vmem:[%s165 + $0x18] sm:$0xff]
      %v177 = vld [vmem:[%s165 + $0x20] sm:$0xff]
      %v178 = vld [vmem:[%s165 + $0x28] sm:$0xff]
      %v179 = vld [vmem:[%s165 + $0x30] sm:$0x7]
      %v180 = vld [vmem:[%s165 + $0x38] sm:$0x7]
      %v181 = vld [vmem:[%s1] sm:$0x3f]
      %v182 = vld [vmem:[%s1 + $0x8] sm:$0x3f]
      %v183 = vperm.slane %v173, 0
      %v184 = vperm.slane %v174, 0
      %v185 = vmul.f32 %v181, %v183
      %v186 = vmul.f32 %v182, %v184
      %v187 = vadd.f32 %v171, %v185
      %v188 = vadd.f32 %v172, %v186
      %s189 = scalar_lea.vmem %s1, 16
      %v190 = vld [vmem:[%s189] sm:$0x3f]
      %v191 = vld [vmem:[%s189 + $0x8] sm:$0x3f]
      %v192 = vperm.slane %v173, 1
      %v193 = vperm.slane %v174, 1
      %v194 = vmul.f32 %v190, %v192
      %v195 = vmul.f32 %v191, %v193
      %v196 = vadd.f32 %v187, %v194
      %v197 = vadd.f32 %v188, %v195
      %s198 = scalar_lea.vmem %s1, 32
      %v199 = vld [vmem:[%s198] sm:$0x3f]
      %v200 = vld [vmem:[%s198 + $0x8] sm:$0x3f]
      %v201 = vperm.slane %v173, 2
      %v202 = vperm.slane %v174, 2
      %v203 = vmul.f32 %v199, %v201
      %v204 = vmul.f32 %v200, %v202
      %v205 = vadd.f32 %v196, %v203
      %v206 = vadd.f32 %v197, %v204
      %s207 = scalar_lea.vmem %s1, 48
      %v208 = vld [vmem:[%s207] sm:$0x3f]
      %v209 = vld [vmem:[%s207 + $0x8] sm:$0x3f]
      %v210 = vperm.slane %v173, 3
      %v211 = vperm.slane %v174, 3
      %v212 = vmul.f32 %v208, %v210
      %v213 = vmul.f32 %v209, %v211
      %v214 = vadd.f32 %v205, %v212
      %v215 = vadd.f32 %v206, %v213
      %s216 = scalar_lea.vmem %s1, 64
      %v217 = vld [vmem:[%s216] sm:$0x3f]
      %v218 = vld [vmem:[%s216 + $0x8] sm:$0x3f]
      %v219 = vperm.slane %v173, 4
      %v220 = vperm.slane %v174, 4
      %v221 = vmul.f32 %v217, %v219
      %v222 = vmul.f32 %v218, %v220
      %v223 = vadd.f32 %v214, %v221
      %v224 = vadd.f32 %v215, %v222
      %s225 = scalar_lea.vmem %s1, 80
      %v226 = vld [vmem:[%s225] sm:$0x3f]
      %v227 = vld [vmem:[%s225 + $0x8] sm:$0x3f]
      %v228 = vperm.slane %v173, 5
      %v229 = vperm.slane %v174, 5
      %v230 = vmul.f32 %v226, %v228
      %v231 = vmul.f32 %v227, %v229
      %v232 = vadd.f32 %v223, %v230
      %v233 = vadd.f32 %v224, %v231
      %s234 = scalar_lea.vmem %s1, 96
      %v235 = vld [vmem:[%s234] sm:$0x3f]
      %v236 = vld [vmem:[%s234 + $0x8] sm:$0x3f]
      %v237 = vperm.slane %v173, 6
      %v238 = vperm.slane %v174, 6
      %v239 = vmul.f32 %v235, %v237
      %v240 = vmul.f32 %v236, %v238
      %v241 = vadd.f32 %v232, %v239
      %v242 = vadd.f32 %v233, %v240
      %s243 = scalar_lea.vmem %s1, 112
      %v244 = vld [vmem:[%s243] sm:$0x3f]
      %v245 = vld [vmem:[%s243 + $0x8] sm:$0x3f]
      %v246 = vperm.slane %v173, 7
      %v247 = vperm.slane %v174, 7
      %v248 = vmul.f32 %v244, %v246
      %v249 = vmul.f32 %v245, %v247
      %v250 = vadd.f32 %v241, %v248
      %v251 = vadd.f32 %v242, %v249
      %s252 = scalar_lea.vmem %s1, 128
      %v253 = vld [vmem:[%s252] sm:$0x3f]
      %v254 = vld [vmem:[%s252 + $0x8] sm:$0x3f]
      %v255 = vperm.slane %v175, 0
      %v256 = vperm.slane %v176, 0
      %v257 = vmul.f32 %v253, %v255
      %v258 = vmul.f32 %v254, %v256
      %v259 = vadd.f32 %v250, %v257
      %v260 = vadd.f32 %v251, %v258
      %s261 = scalar_lea.vmem %s1, 144
      %v262 = vld [vmem:[%s261] sm:$0x3f]
      %v263 = vld [vmem:[%s261 + $0x8] sm:$0x3f]
      %v264 = vperm.slane %v175, 1
      %v265 = vperm.slane %v176, 1
      %v266 = vmul.f32 %v262, %v264
      %v267 = vmul.f32 %v263, %v265
      %v268 = vadd.f32 %v259, %v266
      %v269 = vadd.f32 %v260, %v267
      %s270 = scalar_lea.vmem %s1, 160
      %v271 = vld [vmem:[%s270] sm:$0x3f]
      %v272 = vld [vmem:[%s270 + $0x8] sm:$0x3f]
      %v273 = vperm.slane %v175, 2
      %v274 = vperm.slane %v176, 2
      %v275 = vmul.f32 %v271, %v273
      %v276 = vmul.f32 %v272, %v274
      %v277 = vadd.f32 %v268, %v275
      %v278 = vadd.f32 %v269, %v276
      %s279 = scalar_lea.vmem %s1, 176
      %v280 = vld [vmem:[%s279] sm:$0x3f]
      %v281 = vld [vmem:[%s279 + $0x8] sm:$0x3f]
      %v282 = vperm.slane %v175, 3
      %v283 = vperm.slane %v176, 3
      %v284 = vmul.f32 %v280, %v282
      %v285 = vmul.f32 %v281, %v283
      %v286 = vadd.f32 %v277, %v284
      %v287 = vadd.f32 %v278, %v285
      %s288 = scalar_lea.vmem %s1, 192
      %v289 = vld [vmem:[%s288] sm:$0x3f]
      %v290 = vld [vmem:[%s288 + $0x8] sm:$0x3f]
      %v291 = vperm.slane %v175, 4
      %v292 = vperm.slane %v176, 4
      %v293 = vmul.f32 %v289, %v291
      %v294 = vmul.f32 %v290, %v292
      %v295 = vadd.f32 %v286, %v293
      %v296 = vadd.f32 %v287, %v294
      %s297 = scalar_lea.vmem %s1, 208
      %v298 = vld [vmem:[%s297] sm:$0x3f]
      %v299 = vld [vmem:[%s297 + $0x8] sm:$0x3f]
      %v300 = vperm.slane %v175, 5
      %v301 = vperm.slane %v176, 5
      %v302 = vmul.f32 %v298, %v300
      %v303 = vmul.f32 %v299, %v301
      %v304 = vadd.f32 %v295, %v302
      %v305 = vadd.f32 %v296, %v303
      %s306 = scalar_lea.vmem %s1, 224
      %v307 = vld [vmem:[%s306] sm:$0x3f]
      %v308 = vld [vmem:[%s306 + $0x8] sm:$0x3f]
      %v309 = vperm.slane %v175, 6
      %v310 = vperm.slane %v176, 6
      %v311 = vmul.f32 %v307, %v309
      %v312 = vmul.f32 %v308, %v310
      %v313 = vadd.f32 %v304, %v311
      %v314 = vadd.f32 %v305, %v312
      %s315 = scalar_lea.vmem %s1, 240
      %v316 = vld [vmem:[%s315] sm:$0x3f]
      %v317 = vld [vmem:[%s315 + $0x8] sm:$0x3f]
      %v318 = vperm.slane %v175, 7
      %v319 = vperm.slane %v176, 7
      %v320 = vmul.f32 %v316, %v318
      %v321 = vmul.f32 %v317, %v319
      %v322 = vadd.f32 %v313, %v320
      %v323 = vadd.f32 %v314, %v321
      %s324 = scalar_lea.vmem %s1, 256
      %v325 = vld [vmem:[%s324] sm:$0x3f]
      %v326 = vld [vmem:[%s324 + $0x8] sm:$0x3f]
      %v327 = vperm.slane %v177, 0
      %v328 = vperm.slane %v178, 0
      %v329 = vmul.f32 %v325, %v327
      %v330 = vmul.f32 %v326, %v328
      %v331 = vadd.f32 %v322, %v329
      %v332 = vadd.f32 %v323, %v330
      %s333 = scalar_lea.vmem %s1, 272
      %v334 = vld [vmem:[%s333] sm:$0x3f]
      %v335 = vld [vmem:[%s333 + $0x8] sm:$0x3f]
      %v336 = vperm.slane %v177, 1
      %v337 = vperm.slane %v178, 1
      %v338 = vmul.f32 %v334, %v336
      %v339 = vmul.f32 %v335, %v337
      %v340 = vadd.f32 %v331, %v338
      %v341 = vadd.f32 %v332, %v339
      %s342 = scalar_lea.vmem %s1, 288
      %v343 = vld [vmem:[%s342] sm:$0x3f]
      %v344 = vld [vmem:[%s342 + $0x8] sm:$0x3f]
      %v345 = vperm.slane %v177, 2
      %v346 = vperm.slane %v178, 2
      %v347 = vmul.f32 %v343, %v345
      %v348 = vmul.f32 %v344, %v346
      %v349 = vadd.f32 %v340, %v347
      %v350 = vadd.f32 %v341, %v348
      %s351 = scalar_lea.vmem %s1, 304
      %v352 = vld [vmem:[%s351] sm:$0x3f]
      %v353 = vld [vmem:[%s351 + $0x8] sm:$0x3f]
      %v354 = vperm.slane %v177, 3
      %v355 = vperm.slane %v178, 3
      %v356 = vmul.f32 %v352, %v354
      %v357 = vmul.f32 %v353, %v355
      %v358 = vadd.f32 %v349, %v356
      %v359 = vadd.f32 %v350, %v357
      %s360 = scalar_lea.vmem %s1, 320
      %v361 = vld [vmem:[%s360] sm:$0x3f]
      %v362 = vld [vmem:[%s360 + $0x8] sm:$0x3f]
      %v363 = vperm.slane %v177, 4
      %v364 = vperm.slane %v178, 4
      %v365 = vmul.f32 %v361, %v363
      %v366 = vmul.f32 %v362, %v364
      %v367 = vadd.f32 %v358, %v365
      %v368 = vadd.f32 %v359, %v366
      %s369 = scalar_lea.vmem %s1, 336
      %v370 = vld [vmem:[%s369] sm:$0x3f]
      %v371 = vld [vmem:[%s369 + $0x8] sm:$0x3f]
      %v372 = vperm.slane %v177, 5
      %v373 = vperm.slane %v178, 5
      %v374 = vmul.f32 %v370, %v372
      %v375 = vmul.f32 %v371, %v373
      %v376 = vadd.f32 %v367, %v374
      %v377 = vadd.f32 %v368, %v375
      %s378 = scalar_lea.vmem %s1, 352
      %v379 = vld [vmem:[%s378] sm:$0x3f]
      %v380 = vld [vmem:[%s378 + $0x8] sm:$0x3f]
      %v381 = vperm.slane %v177, 6
      %v382 = vperm.slane %v178, 6
      %v383 = vmul.f32 %v379, %v381
      %v384 = vmul.f32 %v380, %v382
      %v385 = vadd.f32 %v376, %v383
      %v386 = vadd.f32 %v377, %v384
      %s387 = scalar_lea.vmem %s1, 368
      %v388 = vld [vmem:[%s387] sm:$0x3f]
      %v389 = vld [vmem:[%s387 + $0x8] sm:$0x3f]
      %v390 = vperm.slane %v177, 7
      %v391 = vperm.slane %v178, 7
      %v392 = vmul.f32 %v388, %v390
      %v393 = vmul.f32 %v389, %v391
      %v394 = vadd.f32 %v385, %v392
      %v395 = vadd.f32 %v386, %v393
      %s396 = scalar_lea.vmem %s1, 384
      %v397 = vld [vmem:[%s396] sm:$0x3f]
      %v398 = vld [vmem:[%s396 + $0x8] sm:$0x3f]
      %v399 = vperm.slane %v179, 0
      %v400 = vperm.slane %v180, 0
      %v401 = vmul.f32 %v397, %v399
      %v402 = vmul.f32 %v398, %v400
      %v403 = vadd.f32 %v394, %v401
      %v404 = vadd.f32 %v395, %v402
      %s405 = scalar_lea.vmem %s1, 400
      %v406 = vld [vmem:[%s405] sm:$0x3f]
      %v407 = vld [vmem:[%s405 + $0x8] sm:$0x3f]
      %v408 = vperm.slane %v179, 1
      %v409 = vperm.slane %v180, 1
      %v410 = vmul.f32 %v406, %v408
      %v411 = vmul.f32 %v407, %v409
      %v412 = vadd.f32 %v403, %v410
      %v413 = vadd.f32 %v404, %v411
      %s414 = scalar_lea.vmem %s1, 416
      %v415 = vld [vmem:[%s414] sm:$0x3f]
      %v416 = vld [vmem:[%s414 + $0x8] sm:$0x3f]
      %v417 = vperm.slane %v179, 2
      %v418 = vperm.slane %v180, 2
      %v419 = vmul.f32 %v415, %v417
      %v420 = vmul.f32 %v416, %v418
      %v421 = vadd.f32 %v412, %v419
      %v422 = vadd.f32 %v413, %v420
      %423 = vst [vmem:[%s170] sm:$0x3f] %v421
      %424 = vst [vmem:[%s170 + $0x8] sm:$0x3f] %v422
      %p425 = scmp.lt.s32.totalorder %s14, 1
      %s426 = scalar_select %p425, %s14, 1
      %s427 = smul.addr %s426, 2
      %s428 = smul.addr %s427, 8
      %s429 = scalar_lea.vmem %s3, %s428
      // Predicated region
      $region33: #{tpu_custom_call.1} parent=31 // pred_check
        %p430 = pneg %p100
      $region34: #{tpu_custom_call.1} parent=31 // pred_check_branch
        %432 = sbr.rel (%p430) target = $region36
      $region35: #{tpu_custom_call.1} parent=31 // pred_region
        _
      $region36: #{tpu_custom_call.1} parent=31 // pred_fallthru
        _
    $region32: #{tpu_custom_call.1} parent=5 // pred_fallthru
      _
    %p433 = scmp.le.s32.totalorder 2, %s9
    // Predicated region
    $region37: #{tpu_custom_call.1} parent=5 // pred_check
      %p434 = pneg %p433
    $region38: #{tpu_custom_call.1} parent=5 // pred_check_branch
      %436 = sbr.rel (%p434) target = $region40
    $region39: #{tpu_custom_call.1} parent=5 // pred_region
      %s437 = ssub.s32 %s9, 2
      // Predicated region
      $region41: #{tpu_custom_call.1} parent=39 // pred_check
        %p438 = pneg %p106
      $region42: #{tpu_custom_call.1} parent=39 // pred_check_branch
        %440 = sbr.rel (%p438) target = $region44
      $region43: #{tpu_custom_call.1} parent=39 // pred_region
        %p441 = scmp.lt.s32.totalorder %s15, 1
        %s442 = scalar_select %p441, %s15, 1
        %s443 = smul.addr %s442, 2
        %s444 = smul.addr %s443, 8
        %s445 = scalar_lea.vmem %s3, %s444
      $region44: #{tpu_custom_call.1} parent=39 // pred_fallthru
        _
    $region40: #{tpu_custom_call.1} parent=5 // pred_fallthru
      _
  $region6: #{tpu_custom_call.1} parent=0 // loop_footer
    %s13 = sadd.s32 1, %s9
  $region7: #{tpu_custom_call.1} parent=0 // loop_footer_branch
    %8 = sbr.rel target = $region3
  $region8: #{tpu_custom_call.1} parent=0 // loop_exit
    _

</llo_original>
